<compile_context>
chip_gen: v7x
topology: tpu7x:2x2x1
jax: 0.10.0
libtpu: 0.0.40
codegen_flags: <defaults>
</compile_context>

<pallas_src>
import functools

import jax
import jax.numpy as jnp
from jax.experimental import pallas as pl
from jax.experimental.pallas import tpu as pltpu


def _make_kernel(Cin, Wpp, HWp, K9):
    """Kernel closure over the static geometry (one image per grid step)."""

    def kernel(x_ref, w3_ref, w1_ref, b1_ref, out_ref, col_ref):
        # x_ref  : (1, Cin, Hp*Wpp)  flat zero-padded image
        # w3_ref : (Cout, K9+1)      3x3 weights, BN scale folded, BN bias = last col
        # w1_ref : (J, Cout)         1x1 conv weights
        # b1_ref : (J, 1)            1x1 conv bias
        # out_ref: (1, J, HWp)       stride-1 conv output on the padded row pitch
        # col_ref: (K9+1, HWp)       VMEM scratch: im2col patches + constant-1 row
        xv = x_ref[0]                                         # (Cin, Hp*Wpp)

        # In-kernel im2col: 9 contiguous lane windows of the flat padded image.
        for ky in range(3):
            for kx in range(3):
                idx = ky * 3 + kx
                d = ky * Wpp + kx
                col_ref[idx * Cin:(idx + 1) * Cin, :] = xv[:, d:d + HWp]
        # Constant-1 row so the folded BN bias rides in the matmul.
        # (Written every step: with "parallel" megacore splitting each core has
        #  its own scratch, so a program_id==0 guard would be unsafe.)
        col_ref[K9:K9 + 1, :] = jnp.ones((1, HWp), jnp.float32)

        cols = col_ref[...]                                   # (K9+1, HWp)

        # 3x3 conv + BN (scale & bias folded) as one MXU matmul, then ReLU.
        y = jnp.dot(w3_ref[...], cols, preferred_element_type=jnp.float32)
        y = jnp.maximum(y, 0.0)                               # (Cout, HWp)

        # 1x1 conv + bias + sigmoid (exp on EUP, exact reciprocal).
        z = jnp.dot(w1_ref[...], y, preferred_element_type=jnp.float32)
        z = z + b1_ref[...]                                   # (J, HWp)
        out_ref[0] = pl.reciprocal(1.0 + jnp.exp(-z), approx=False)

    return kernel


@functools.partial(jax.jit, static_argnames=("stride", "eps"))
def net_2d_forward(x_nchw, params, stride=1, eps=1e-5):
    """Pallas implementation. x_nchw: (N, Cin, H, W) float32. Returns NCHW."""
    N, Cin, H, W = x_nchw.shape
    w3 = params["conv3_w"].astype(jnp.float32)          # (Cout, Cin, 3, 3) OIHW
    Cout = w3.shape[0]
    w1 = params["conv1_w"].astype(jnp.float32)          # (J, Cout, 1, 1)
    J = w1.shape[0]

    Wpp = W + 2                  # padded row pitch == kernel output row pitch
    Hp = H + 3                   # 1 top pad + 1 bottom pad + 1 slack row
    HWp = H * Wpp                # stride-1 output columns (incl. 2 junk/row)
    K9 = 9 * Cin

    # --- only wrapper-side data op: zero-pad, then a free flat reshape -------
    x_pad = jnp.pad(x_nchw.astype(jnp.float32),
                    ((0, 0), (0, 0), (1, 2), (1, 1)))
    x_flat = x_pad.reshape(N, Cin, Hp * Wpp)

    # --- fold eval-mode BN into the 3x3 matmul (scale -> weights, bias -> col)
    inv_std = 1.0 / jnp.sqrt(params["bn_var"].astype(jnp.float32) + eps)
    scale = params["bn_gamma"].astype(jnp.float32) * inv_std            # (Cout,)
    bn_bias = (params["bn_beta"].astype(jnp.float32)
               - params["bn_mean"].astype(jnp.float32) * scale)         # (Cout,)
    # K ordering matches the in-kernel patch stacking: (ky, kx, cin)
    w3_2d = jnp.transpose(w3, (0, 2, 3, 1)).reshape(Cout, K9) * scale[:, None]
    w3_aug = jnp.concatenate([w3_2d, bn_bias[:, None]], axis=1)         # (Cout, K9+1)
    w1_t = w1[:, :, 0, 0]                                               # (J, Cout)
    b1 = params["conv1_b"].astype(jnp.float32).reshape(J, 1)

    kernel = _make_kernel(Cin, Wpp, HWp, K9)
    out = pl.pallas_call(
        kernel,
        out_shape=jax.ShapeDtypeStruct((N, J, HWp), jnp.float32),
        grid_spec=pltpu.PrefetchScalarGridSpec(
            num_scalar_prefetch=0,
            grid=(N,),
            in_specs=[
                pl.BlockSpec((1, Cin, Hp * Wpp), lambda n: (n, 0, 0)),
                pl.BlockSpec((Cout, K9 + 1), lambda n: (0, 0)),
                pl.BlockSpec((J, Cout), lambda n: (0, 0)),
                pl.BlockSpec((J, 1), lambda n: (0, 0)),
            ],
            out_specs=pl.BlockSpec((1, J, HWp), lambda n: (n, 0, 0)),
            scratch_shapes=[pltpu.VMEM((K9 + 1, HWp), jnp.float32)],
        ),
        compiler_params=pltpu.CompilerParams(
            dimension_semantics=("parallel",)),
    )(x_flat, w3_aug, w1_t, b1)

    # Drop the junk columns of the padded row pitch and apply the conv stride.
    out = out.reshape(N, J, H, Wpp)
    return out[:, :, 0:H:stride, 0:W:stride]


def ref_forward(x, params, stride=1, eps=1e-5):
    """Pure-JAX reference matching the PyTorch module (eval-mode BN)."""
    y = jax.lax.conv_general_dilated(
        x, params["conv3_w"], (stride, stride),
        padding=((1, 1), (1, 1)),
        dimension_numbers=("NCHW", "OIHW", "NCHW"),
        precision=jax.lax.Precision.HIGHEST)
    scale = params["bn_gamma"] / jnp.sqrt(params["bn_var"] + eps)
    bias = params["bn_beta"] - params["bn_mean"] * scale
    y = y * scale[None, :, None, None] + bias[None, :, None, None]
    y = jnp.maximum(y, 0.0)
    z = jax.lax.conv_general_dilated(
        y, params["conv1_w"], (1, 1), padding="VALID",
        dimension_numbers=("NCHW", "OIHW", "NCHW"),
        precision=jax.lax.Precision.HIGHEST)
    z = z + params["conv1_b"][None, :, None, None]
    return jax.nn.sigmoid(z)


if __name__ == "__main__":
    # Small shapes consistent with net_2d: batch=2, Cin=4, H=W=16,
    # output_features=32, joints=21.
    N, Cin, H, W = 2, 4, 16, 16
    Cout, J = 32, 21

    key = jax.random.PRNGKey(0)
    kx_, k3, k1, kb, kg, kbeta, km, kv = jax.random.split(key, 8)

    x = jax.random.normal(kx_, (N, Cin, H, W), jnp.float32)

    params = {
        "conv3_w": 0.1 * jax.random.normal(k3, (Cout, Cin, 3, 3), jnp.float32),
        "conv1_w": 0.1 * jax.random.normal(k1, (J, Cout, 1, 1), jnp.float32),
        "conv1_b": 0.1 * jax.random.normal(kb, (J,), jnp.float32),
        "bn_gamma": 1.0 + 0.1 * jax.random.normal(kg, (Cout,), jnp.float32),
        "bn_beta": 0.1 * jax.random.normal(kbeta, (Cout,), jnp.float32),
        "bn_mean": 0.1 * jax.random.normal(km, (Cout,), jnp.float32),
        "bn_var": 1.0 + 0.1 * jax.random.uniform(kv, (Cout,), jnp.float32),
    }

    # stride = 1 (primary config)
    out1 = jax.block_until_ready(net_2d_forward(x, params, stride=1))
    ref1 = jax.block_until_ready(ref_forward(x, params, stride=1))
    assert out1.shape == (N, J, H, W), out1.shape
    assert jnp.allclose(out1, ref1, rtol=1e-3, atol=1e-3), float(
        jnp.max(jnp.abs(out1 - ref1)))

    # stride = 2 (same kernel; stride applied as a free output slice)
    out2 = jax.block_until_ready(net_2d_forward(x, params, stride=2))
    ref2 = jax.block_until_ready(ref_forward(x, params, stride=2))
    assert out2.shape == ref2.shape, (out2.shape, ref2.shape)
    assert jnp.allclose(out2, ref2, rtol=1e-3, atol=1e-3), float(
        jnp.max(jnp.abs(out2 - ref2)))

    print("KERNEL_OK")
</pallas_src>

<mosaic_0001>
module attributes {stable_mosaic.version = 11 : i64} {
  func.func @kernel(%arg0: i32, %arg1: memref<1x4x342xf32, #tpu.memory_space<vmem>>, %arg2: memref<32x37xf32, #tpu.memory_space<vmem>>, %arg3: memref<21x32xf32, #tpu.memory_space<vmem>>, %arg4: memref<21x1xf32, #tpu.memory_space<vmem>>, %arg5: memref<1x21x288xf32, #tpu.memory_space<vmem>>, %arg6: memref<37x288xf32, #tpu.memory_space<vmem>>) attributes {dimension_semantics = [#tpu.dimension_semantics<parallel>], iteration_bounds = array<i64: 2>, scalar_prefetch = 0 : i64, scratch_operands = 1 : i64, tpu.core_type = #tpu.core_type<tc>, window_params = [{transform_indices = @transform_0, window_bounds = array<i64: 1, 4, 342>}, {pipeline_mode = #tpu.pipeline_mode<synchronous>, transform_indices = @transform_1, window_bounds = array<i64: 32, 37>}, {pipeline_mode = #tpu.pipeline_mode<synchronous>, transform_indices = @transform_2, window_bounds = array<i64: 21, 32>}, {pipeline_mode = #tpu.pipeline_mode<synchronous>, transform_indices = @transform_3, window_bounds = array<i64: 21, 1>}, {transform_indices = @transform_4, window_bounds = array<i64: 1, 21, 288>}]} {
    %c0 = arith.constant 0 : index
    %c0_0 = arith.constant 0 : index
    %c0_1 = arith.constant 0 : index
    %0 = vector.load %arg1[%c0, %c0_0, %c0_1] : memref<1x4x342xf32, #tpu.memory_space<vmem>>, vector<1x4x342xf32>
    %1 = vector.shape_cast %0 : vector<1x4x342xf32> to vector<4x342xf32>
    %2 = vector.extract_strided_slice %1 {offsets = [0, 0], sizes = [4, 288], strides = [1, 1]} : vector<4x342xf32> to vector<4x288xf32>
    %c0_2 = arith.constant 0 : index
    %c0_3 = arith.constant 0 : index
    %3 = vector.load %arg6[%c0_2, %c0_3] : memref<37x288xf32, #tpu.memory_space<vmem>>, vector<4x288xf32>
    tpu.vector_store %arg6[%c0_2, %c0_3], %2 {strides = array<i32>} : memref<37x288xf32, #tpu.memory_space<vmem>>, vector<4x288xf32>,
    %4 = vector.extract_strided_slice %1 {offsets = [0, 1], sizes = [4, 288], strides = [1, 1]} : vector<4x342xf32> to vector<4x288xf32>
    %c4 = arith.constant 4 : index
    %c0_4 = arith.constant 0 : index
    %5 = vector.load %arg6[%c4, %c0_4] : memref<37x288xf32, #tpu.memory_space<vmem>>, vector<4x288xf32>
    tpu.vector_store %arg6[%c4, %c0_4], %4 {strides = array<i32>} : memref<37x288xf32, #tpu.memory_space<vmem>>, vector<4x288xf32>,
    %6 = vector.extract_strided_slice %1 {offsets = [0, 2], sizes = [4, 288], strides = [1, 1]} : vector<4x342xf32> to vector<4x288xf32>
    %c8 = arith.constant 8 : index
    %c0_5 = arith.constant 0 : index
    %7 = vector.load %arg6[%c8, %c0_5] : memref<37x288xf32, #tpu.memory_space<vmem>>, vector<4x288xf32>
    tpu.vector_store %arg6[%c8, %c0_5], %6 {strides = array<i32>} : memref<37x288xf32, #tpu.memory_space<vmem>>, vector<4x288xf32>,
    %8 = vector.extract_strided_slice %1 {offsets = [0, 18], sizes = [4, 288], strides = [1, 1]} : vector<4x342xf32> to vector<4x288xf32>
    %c12 = arith.constant 12 : index
    %c0_6 = arith.constant 0 : index
    %9 = vector.load %arg6[%c12, %c0_6] : memref<37x288xf32, #tpu.memory_space<vmem>>, vector<4x288xf32>
    tpu.vector_store %arg6[%c12, %c0_6], %8 {strides = array<i32>} : memref<37x288xf32, #tpu.memory_space<vmem>>, vector<4x288xf32>,
    %10 = vector.extract_strided_slice %1 {offsets = [0, 19], sizes = [4, 288], strides = [1, 1]} : vector<4x342xf32> to vector<4x288xf32>
    %c16 = arith.constant 16 : index
    %c0_7 = arith.constant 0 : index
    %11 = vector.load %arg6[%c16, %c0_7] : memref<37x288xf32, #tpu.memory_space<vmem>>, vector<4x288xf32>
    tpu.vector_store %arg6[%c16, %c0_7], %10 {strides = array<i32>} : memref<37x288xf32, #tpu.memory_space<vmem>>, vector<4x288xf32>,
    %12 = vector.extract_strided_slice %1 {offsets = [0, 20], sizes = [4, 288], strides = [1, 1]} : vector<4x342xf32> to vector<4x288xf32>
    %c20 = arith.constant 20 : index
    %c0_8 = arith.constant 0 : index
    %13 = vector.load %arg6[%c20, %c0_8] : memref<37x288xf32, #tpu.memory_space<vmem>>, vector<4x288xf32>
    tpu.vector_store %arg6[%c20, %c0_8], %12 {strides = array<i32>} : memref<37x288xf32, #tpu.memory_space<vmem>>, vector<4x288xf32>,
    %14 = vector.extract_strided_slice %1 {offsets = [0, 36], sizes = [4, 288], strides = [1, 1]} : vector<4x342xf32> to vector<4x288xf32>
    %c24 = arith.constant 24 : index
    %c0_9 = arith.constant 0 : index
    %15 = vector.load %arg6[%c24, %c0_9] : memref<37x288xf32, #tpu.memory_space<vmem>>, vector<4x288xf32>
    tpu.vector_store %arg6[%c24, %c0_9], %14 {strides = array<i32>} : memref<37x288xf32, #tpu.memory_space<vmem>>, vector<4x288xf32>,
    %16 = vector.extract_strided_slice %1 {offsets = [0, 37], sizes = [4, 288], strides = [1, 1]} : vector<4x342xf32> to vector<4x288xf32>
    %c28 = arith.constant 28 : index
    %c0_10 = arith.constant 0 : index
    %17 = vector.load %arg6[%c28, %c0_10] : memref<37x288xf32, #tpu.memory_space<vmem>>, vector<4x288xf32>
    tpu.vector_store %arg6[%c28, %c0_10], %16 {strides = array<i32>} : memref<37x288xf32, #tpu.memory_space<vmem>>, vector<4x288xf32>,
    %18 = vector.extract_strided_slice %1 {offsets = [0, 38], sizes = [4, 288], strides = [1, 1]} : vector<4x342xf32> to vector<4x288xf32>
    %c32 = arith.constant 32 : index
    %c0_11 = arith.constant 0 : index
    %19 = vector.load %arg6[%c32, %c0_11] : memref<37x288xf32, #tpu.memory_space<vmem>>, vector<4x288xf32>
    tpu.vector_store %arg6[%c32, %c0_11], %18 {strides = array<i32>} : memref<37x288xf32, #tpu.memory_space<vmem>>, vector<4x288xf32>,
    %cst = arith.constant 1.000000e+00 : f32
    %20 = vector.broadcast %cst : f32 to vector<1x288xf32>
    %c36 = arith.constant 36 : index
    %c0_12 = arith.constant 0 : index
    %21 = vector.load %arg6[%c36, %c0_12] : memref<37x288xf32, #tpu.memory_space<vmem>>, vector<1x288xf32>
    tpu.vector_store %arg6[%c36, %c0_12], %20 {strides = array<i32>} : memref<37x288xf32, #tpu.memory_space<vmem>>, vector<1x288xf32>,
    %c0_13 = arith.constant 0 : index
    %c0_14 = arith.constant 0 : index
    %22 = vector.load %arg6[%c0_13, %c0_14] : memref<37x288xf32, #tpu.memory_space<vmem>>, vector<37x288xf32>
    %c0_15 = arith.constant 0 : index
    %c0_16 = arith.constant 0 : index
    %23 = vector.load %arg2[%c0_15, %c0_16] : memref<32x37xf32, #tpu.memory_space<vmem>>, vector<32x37xf32>
    %cst_17 = arith.constant dense<0.000000e+00> : vector<32x288xf32>
    %24 = tpu.matmul %23, %22, %cst_17 {dimension_numbers = #tpu.dot_dimension_numbers<[1], [0], [0], [1], [0, 0, 1, 1], [], []>} : vector<32x37xf32>, vector<37x288xf32>, vector<32x288xf32> -> vector<32x288xf32>
    %cst_18 = arith.constant 0.000000e+00 : f32
    %25 = vector.broadcast %cst_18 : f32 to vector<32x288xf32>
    %26 = arith.maximumf %24, %25 : vector<32x288xf32>
    %c0_19 = arith.constant 0 : index
    %c0_20 = arith.constant 0 : index
    %27 = vector.load %arg3[%c0_19, %c0_20] : memref<21x32xf32, #tpu.memory_space<vmem>>, vector<21x32xf32>
    %cst_21 = arith.constant dense<0.000000e+00> : vector<21x288xf32>
    %28 = tpu.matmul %27, %26, %cst_21 {dimension_numbers = #tpu.dot_dimension_numbers<[1], [0], [0], [1], [0, 0, 1, 1], [], []>} : vector<21x32xf32>, vector<32x288xf32>, vector<21x288xf32> -> vector<21x288xf32>
    %c0_22 = arith.constant 0 : index
    %c0_23 = arith.constant 0 : index
    %29 = vector.load %arg4[%c0_22, %c0_23] : memref<21x1xf32, #tpu.memory_space<vmem>>, vector<21x1xf32>
    %30 = vector.broadcast %29 : vector<21x1xf32> to vector<21x288xf32>
    %31 = arith.addf %28, %30 : vector<21x288xf32>
    %cst_24 = arith.constant 0.000000e+00 : f32
    %32 = vector.broadcast %cst_24 : f32 to vector<21x288xf32>
    %33 = arith.subf %32, %31 : vector<21x288xf32>
    %34 = math.exp %33 : vector<21x288xf32>
    %cst_25 = arith.constant 1.000000e+00 : f32
    %35 = vector.broadcast %cst_25 : f32 to vector<21x288xf32>
    %36 = arith.addf %35, %34 : vector<21x288xf32>
    %37 = tpu.reciprocal %36 : vector<21x288xf32> -> vector<21x288xf32>
    %c0_26 = arith.constant 0 : index
    %c0_27 = arith.constant 0 : index
    %c0_28 = arith.constant 0 : index
    %38 = vector.load %arg5[%c0_26, %c0_27, %c0_28] : memref<1x21x288xf32, #tpu.memory_space<vmem>>, vector<1x21x288xf32>
    %39 = vector.shape_cast %38 : vector<1x21x288xf32> to vector<21x288xf32>
    %40 = vector.shape_cast %37 : vector<21x288xf32> to vector<1x21x288xf32>
    tpu.vector_store %arg5[%c0_26, %c0_27, %c0_28], %40 {strides = array<i32>} : memref<1x21x288xf32, #tpu.memory_space<vmem>>, vector<1x21x288xf32>,
    return
  }
  func.func @transform_0(%arg0: i32) -> (i32, i32, i32) {
    %c0_i32 = arith.constant 0 : i32
    %c0_i32_0 = arith.constant 0 : i32
    %c0_i32_1 = arith.constant 0 : i32
    return %arg0, %c0_i32, %c0_i32_0 : i32, i32, i32
  }
  func.func @transform_1(%arg0: i32) -> (i32, i32) {
    %c0_i32 = arith.constant 0 : i32
    %c0_i32_0 = arith.constant 0 : i32
    %c0_i32_1 = arith.constant 0 : i32
    return %c0_i32, %c0_i32_0 : i32, i32
  }
  func.func @transform_2(%arg0: i32) -> (i32, i32) {
    %c0_i32 = arith.constant 0 : i32
    %c0_i32_0 = arith.constant 0 : i32
    %c0_i32_1 = arith.constant 0 : i32
    return %c0_i32, %c0_i32_0 : i32, i32
  }
  func.func @transform_3(%arg0: i32) -> (i32, i32) {
    %c0_i32 = arith.constant 0 : i32
    %c0_i32_0 = arith.constant 0 : i32
    %c0_i32_1 = arith.constant 0 : i32
    return %c0_i32, %c0_i32_0 : i32, i32
  }
  func.func @transform_4(%arg0: i32) -> (i32, i32, i32) {
    %c0_i32 = arith.constant 0 : i32
    %c0_i32_0 = arith.constant 0 : i32
    %c0_i32_1 = arith.constant 0 : i32
    return %arg0, %c0_i32, %c0_i32_0 : i32, i32, i32
  }
}

</mosaic_0001>

<llo_original>
// kernel: net_2d_forward.1
$region0: #{net_2d_forward.1}
  #allocation0 [shape = 'u32[]', space=smem, size = 0x4, offset = 0x4, fixed_abs, tag = 'smem constant byte address 0x4 - core index']
  #allocation1 [shape = 'u32[144,128]{1,0:T(1,128)}', space=vmem, size = 0x12000, scoped, tag = 'internal scratch']
  #allocation2 [shape = 'f32[37,288]{1,0:T(8,128)}', space=vmem, size = 0xf000, scoped, tag = 'scratch operand']
  %s0 = inlined_call_operand.vmem [shape: f32[2,4,342], index: 0, kind: input, shape index: {}]
  %s1 = inlined_call_operand.vmem [shape: f32[32,37], index: 1, kind: input, shape index: {}]
  %s2 = inlined_call_operand.vmem [shape: f32[21,32], index: 2, kind: input, shape index: {}]
  %s3 = inlined_call_operand.vmem [shape: f32[21,1], index: 3, kind: input, shape index: {}]
  %s4 = inlined_call_operand.vmem [shape: f32[2,21,288], index: 4, kind: output, shape index: {}]
  %s5 = sld [smem:[#allocation0]]
  $region49: #{net_2d_forward.1} parent=0
    _
  %s7 = ssub.s32 1, %s5
  %s8 = scalar_select 0, %s7, %s5
  loop: start=0, step=1, limit=4
  $region2: #{net_2d_forward.1} parent=0 // loop_pre_header
    _
  $region3: #{net_2d_forward.1} parent=0 // loop_header
    %s10 = sphi 0, %s14
    %p11 = scmp.ge.s32.totalorder %s10, 4
    %s20 = sphi 0, %s22
    %s23 = sphi 0, %s20
    %s24 = sphi 0, %s23
    %s40 = sphi 0, %s24
    %s44 = sphi 0, %s44
    %s46 = sphi 0, %s44
    %s47 = sphi 0, %s46
    %s61 = sphi 0, %s47
    %s65 = sphi 0, %s65
    %s67 = sphi 0, %s65
    %s68 = sphi 0, %s67
    %s82 = sphi 0, %s68
    %s86 = sphi 0, %s86
    %s88 = sphi 0, %s86
    %s89 = sphi 0, %s88
    %s103 = sphi 0, %s89
    %s109 = sphi 0, %s111
    %s112 = sphi 0, %s109
    %s113 = sphi 0, %s112
    %s129 = sphi 0, %s113
  $region4: #{net_2d_forward.1} parent=0 // loop_header_branch
    %13 = sbr.rel (%p11) target = $region8
  $region5: #{net_2d_forward.1} parent=0 // loop_body
    %s15 = ssub.s32 %s10, 1
    %s16 = ssub.s32 %s10, 2
    %s17 = sadd.s32 %s10, 1
    %s18 = ssub.s32 %s10, %s17
    %p19 = scmp.eq.s32.totalorder %s18, 0
    %s21 = sadd.s32 %s20, 1
    %s22 = scalar_select %p19, %s20, %s21
    %p25 = pneg %p19
    %p26 = scmp.eq.s32.totalorder %s10, 1
    %p27 = por %p25, %p26
    %p28 = scmp.ne.s32.totalorder %s20, %s23
    %p29 = scmp.eq.s32.totalorder %s10, 0
    %p30 = por %p28, %p29
    %p31 = scmp.ne.s32.totalorder %s20, %s23
    %p32 = scmp.eq.s32.totalorder %s15, 1
    %p33 = por %p31, %p32
    %p34 = scmp.ne.s32.totalorder %s23, %s24
    %p35 = scmp.eq.s32.totalorder %s15, 0
    %p36 = por %p34, %p35
    %p37 = scmp.ne.s32.totalorder %s23, %s24
    %p38 = scmp.eq.s32.totalorder %s16, 1
    %p39 = por %p37, %p38
    %p41 = scmp.ne.s32.totalorder %s24, %s40
    %p42 = scmp.eq.s32.totalorder %s16, 0
    %p43 = por %p41, %p42
    %s45 = sadd.s32 %s44, 1
    %p48 = scmp.eq.s32.totalorder %s10, 1
    %p49 = scmp.ne.s32.totalorder %s44, %s46
    %p50 = scmp.eq.s32.totalorder %s10, 0
    %p51 = por %p49, %p50
    %p52 = scmp.ne.s32.totalorder %s44, %s46
    %p53 = scmp.eq.s32.totalorder %s15, 1
    %p54 = por %p52, %p53
    %p55 = scmp.ne.s32.totalorder %s46, %s47
    %p56 = scmp.eq.s32.totalorder %s15, 0
    %p57 = por %p55, %p56
    %p58 = scmp.ne.s32.totalorder %s46, %s47
    %p59 = scmp.eq.s32.totalorder %s16, 1
    %p60 = por %p58, %p59
    %p62 = scmp.ne.s32.totalorder %s47, %s61
    %p63 = scmp.eq.s32.totalorder %s16, 0
    %p64 = por %p62, %p63
    %s66 = sadd.s32 %s65, 1
    %p69 = scmp.eq.s32.totalorder %s10, 1
    %p70 = scmp.ne.s32.totalorder %s65, %s67
    %p71 = scmp.eq.s32.totalorder %s10, 0
    %p72 = por %p70, %p71
    %p73 = scmp.ne.s32.totalorder %s65, %s67
    %p74 = scmp.eq.s32.totalorder %s15, 1
    %p75 = por %p73, %p74
    %p76 = scmp.ne.s32.totalorder %s67, %s68
    %p77 = scmp.eq.s32.totalorder %s15, 0
    %p78 = por %p76, %p77
    %p79 = scmp.ne.s32.totalorder %s67, %s68
    %p80 = scmp.eq.s32.totalorder %s16, 1
    %p81 = por %p79, %p80
    %p83 = scmp.ne.s32.totalorder %s68, %s82
    %p84 = scmp.eq.s32.totalorder %s16, 0
    %p85 = por %p83, %p84
    %s87 = sadd.s32 %s86, 1
    %p90 = scmp.eq.s32.totalorder %s10, 1
    %p91 = scmp.ne.s32.totalorder %s86, %s88
    %p92 = scmp.eq.s32.totalorder %s10, 0
    %p93 = por %p91, %p92
    %p94 = scmp.ne.s32.totalorder %s86, %s88
    %p95 = scmp.eq.s32.totalorder %s15, 1
    %p96 = por %p94, %p95
    %p97 = scmp.ne.s32.totalorder %s88, %s89
    %p98 = scmp.eq.s32.totalorder %s15, 0
    %p99 = por %p97, %p98
    %p100 = scmp.ne.s32.totalorder %s88, %s89
    %p101 = scmp.eq.s32.totalorder %s16, 1
    %p102 = por %p100, %p101
    %p104 = scmp.ne.s32.totalorder %s89, %s103
    %p105 = scmp.eq.s32.totalorder %s16, 0
    %p106 = por %p104, %p105
    %s107 = ssub.s32 %s10, %s17
    %p108 = scmp.eq.s32.totalorder %s107, 0
    %s110 = sadd.s32 %s109, 1
    %s111 = scalar_select %p108, %s109, %s110
    %p114 = pneg %p108
    %p115 = scmp.eq.s32.totalorder %s10, 1
    %p116 = por %p114, %p115
    %p117 = scmp.ne.s32.totalorder %s109, %s112
    %p118 = scmp.eq.s32.totalorder %s10, 0
    %p119 = por %p117, %p118
    %p120 = scmp.ne.s32.totalorder %s109, %s112
    %p121 = scmp.eq.s32.totalorder %s15, 1
    %p122 = por %p120, %p121
    %p123 = scmp.ne.s32.totalorder %s112, %s113
    %p124 = scmp.eq.s32.totalorder %s15, 0
    %p125 = por %p123, %p124
    %p126 = scmp.ne.s32.totalorder %s112, %s113
    %p127 = scmp.eq.s32.totalorder %s16, 1
    %p128 = por %p126, %p127
    %p130 = scmp.ne.s32.totalorder %s113, %s129
    %p131 = scmp.eq.s32.totalorder %s16, 0
    %p132 = por %p130, %p131
    %p133 = scmp.le.s32.totalorder 1, %s10
    %p134 = scmp.lt.s32.totalorder %s10, 3
    %p135 = pnand %p133, %p134
    %p136 = pneg %p135
    // Predicated region
    $region9: #{net_2d_forward.1} parent=5 // pred_check
      _
    $region10: #{net_2d_forward.1} parent=5 // pred_check_branch
      %138 = sbr.rel (%p135) target = $region12
    $region11: #{net_2d_forward.1} parent=5 // pred_region
      %s139 = ssub.s32 %s10, 1
      // Predicated region
      $region13: #{net_2d_forward.1} parent=11 // pred_check
        %p140 = pneg %p57
      $region14: #{net_2d_forward.1} parent=11 // pred_check_branch
        %142 = sbr.rel (%p140) target = $region16
      $region15: #{net_2d_forward.1} parent=11 // pred_region
        _
      $region16: #{net_2d_forward.1} parent=11 // pred_fallthru
        _
      // Predicated region
      $region17: #{net_2d_forward.1} parent=11 // pred_check
        %p143 = pneg %p78
      $region18: #{net_2d_forward.1} parent=11 // pred_check_branch
        %145 = sbr.rel (%p143) target = $region20
      $region19: #{net_2d_forward.1} parent=11 // pred_region
        _
      $region20: #{net_2d_forward.1} parent=11 // pred_fallthru
        _
      // Predicated region
      $region21: #{net_2d_forward.1} parent=11 // pred_check
        %p146 = pneg %p99
      $region22: #{net_2d_forward.1} parent=11 // pred_check_branch
        %148 = sbr.rel (%p146) target = $region24
      $region23: #{net_2d_forward.1} parent=11 // pred_region
        _
      $region24: #{net_2d_forward.1} parent=11 // pred_fallthru
        _
    $region12: #{net_2d_forward.1} parent=5 // pred_fallthru
      _
    %p149 = scmp.lt.s32.totalorder %s10, 2
    // Predicated region
    $region25: #{net_2d_forward.1} parent=5 // pred_check
      %p150 = pneg %p149
    $region26: #{net_2d_forward.1} parent=5 // pred_check_branch
      %152 = sbr.rel (%p150) target = $region28
    $region27: #{net_2d_forward.1} parent=5 // pred_region
      // Predicated region
      $region29: #{net_2d_forward.1} parent=27 // pred_check
        %p153 = pneg %p30
      $region30: #{net_2d_forward.1} parent=27 // pred_check_branch
        %155 = sbr.rel (%p153) target = $region32
      $region31: #{net_2d_forward.1} parent=27 // pred_region
        %p156 = scmp.lt.s32.totalorder %s10, 1
        %s157 = scalar_select %p156, %s10, 1
        %s158 = smul.addr %s157, 3
        %s159 = smul.addr %s158, 4
        %s160 = scalar_lea.vmem %s0, %s159
      $region32: #{net_2d_forward.1} parent=27 // pred_fallthru
        _
    $region28: #{net_2d_forward.1} parent=5 // pred_fallthru
      _
    %p161 = scmp.le.s32.totalorder 1, %s10
    %p162 = scmp.lt.s32.totalorder %s10, 3
    %p163 = pnand %p161, %p162
    %p164 = pneg %p163
    // Predicated region
    $region33: #{net_2d_forward.1} parent=5 // pred_check
      _
    $region34: #{net_2d_forward.1} parent=5 // pred_check_branch
      %166 = sbr.rel (%p163) target = $region36
    $region35: #{net_2d_forward.1} parent=5 // pred_region
      %s167 = ssub.s32 %s10, 1
      %p168 = scmp.lt.s32.totalorder %s15, 1
      %s169 = scalar_select %p168, %s15, 1
      %s170 = smul.addr %s169, 3
      %s171 = smul.addr %s170, 4
      %s172 = scalar_lea.vmem %s0, %s171
      %p173 = pneg %p36
      %p174 = pneg %p33
      %p175 = pneg %p57
      %p176 = pneg %p54
      %p177 = pneg %p78
      %p178 = pneg %p75
      %p179 = pneg %p99
      %p180 = pneg %p96
      %p181 = pneg %p125
      %p182 = pneg %p122
      %p183 = scmp.lt.s32.totalorder %s15, 1
      %s184 = scalar_select %p183, %s15, 1
      %s185 = smul.addr %s184, 9
      %s186 = smul.addr %s185, 8
      %s187 = scalar_lea.vmem %s4, %s186
      %p188 = scmp.lt.s32.totalorder %s15, 1
      %s189 = scalar_select %p188, %s15, 1
      %s190 = smul.addr %s189, 3
      %s191 = smul.addr %s190, 4
      %s192 = scalar_lea.vmem %s0, %s191
      %p193 = scmp.lt.s32.totalorder %s15, 1
      %s194 = scalar_select %p193, %s15, 1
      %s195 = smul.addr %s194, 9
      %s196 = smul.addr %s195, 8
      %s197 = scalar_lea.vmem %s4, %s196
      %v198 = vld [vmem:[%s192] sm:$0xff]
      %v199 = vld [vmem:[%s192 + $0x8] sm:$0xf]
      %v202 = vcombine.high %v198, %v198
      %204 = vst [vmem:[#allocation2] sm:$0xf] %v198
      %205 = vst [vmem:[#allocation2 + $0x8] sm:$0xf] %v202
      %vm206 = vcmask 257024
      %207 = vst.msk [vmem:[#allocation2 + $0x10] sm:$0xf] %vm206, %v199
      %v208 = vcombine.low %v198, %v198
      %v209 = vcombine.low %v199, %v199
      %210 = vrot.lane.b32.xlu0 %v208, 127
      %v211 = vpop.permute.xlu0 %210
      %212 = vrot.lane.b32.xlu0 %v198, 127
      %v213 = vpop.permute.xlu0 %212
      %214 = vrot.lane.b32.xlu0 %v209, 127
      %v215 = vpop.permute.xlu0 %214
      %vm216 = vcmask 1039360
      %v217 = vsel %vm216, %v211, %v213
      %v218 = vsel %vm216, %v213, %v215
      %222 = vst [vmem:[#allocation2] sm:$0xf0] %v217
      %223 = vst [vmem:[#allocation2 + $0x8] sm:$0xf0] %v218
      %vm224 = vcmask 261124
      %225 = vst.msk [vmem:[#allocation2 + $0x10] sm:$0xf0] %vm224, %v215
      %226 = vrot.lane.b32.xlu0 %v198, 126
      %v227 = vpop.permute.xlu0 %226
      %228 = vrot.lane.b32.xlu0 %v202, 126
      %v229 = vpop.permute.xlu0 %228
      %230 = vrot.lane.b32.xlu0 %v199, 126
      %v231 = vpop.permute.xlu0 %230
      %vm232 = vcmask 1031168
      %v233 = vsel %vm232, %v227, %v229
      %v234 = vsel %vm232, %v229, %v231
      %238 = vst [vmem:[#allocation2 + $0x18] sm:$0xf] %v233
      %239 = vst [vmem:[#allocation2 + $0x20] sm:$0xf] %v234
      %240 = vst.msk [vmem:[#allocation2 + $0x28] sm:$0xf] %vm206, %v231
      %241 = vrot.lane.b32.xlu0 %v208, 110
      %v242 = vpop.permute.xlu0 %241
      %243 = vrot.lane.b32.xlu0 %v198, 110
      %v244 = vpop.permute.xlu0 %243
      %245 = vrot.lane.b32.xlu0 %v209, 110
      %v246 = vpop.permute.xlu0 %245
      %vm247 = vcmask 900096
      %v248 = vsel %vm247, %v242, %v244
      %v249 = vsel %vm247, %v244, %v246
      %253 = vst [vmem:[#allocation2 + $0x18] sm:$0xf0] %v248
      %254 = vst [vmem:[#allocation2 + $0x20] sm:$0xf0] %v249
      %255 = vst.msk [vmem:[#allocation2 + $0x28] sm:$0xf0] %vm224, %v246
      %256 = vrot.lane.b32.xlu0 %v198, 109
      %v257 = vpop.permute.xlu0 %256
      %258 = vrot.lane.b32.xlu0 %v202, 109
      %v259 = vpop.permute.xlu0 %258
      %260 = vrot.lane.b32.xlu0 %v199, 109
      %v261 = vpop.permute.xlu0 %260
      %vm262 = vcmask 891904
      %v263 = vsel %vm262, %v257, %v259
      %v264 = vsel %vm262, %v259, %v261
      %268 = vst [vmem:[#allocation2 + $0x30] sm:$0xf] %v263
      %269 = vst [vmem:[#allocation2 + $0x38] sm:$0xf] %v264
      %270 = vst.msk [vmem:[#allocation2 + $0x40] sm:$0xf] %vm206, %v261
      %271 = vrot.lane.b32.xlu0 %v208, 108
      %v272 = vpop.permute.xlu0 %271
      %273 = vrot.lane.b32.xlu0 %v198, 108
      %v274 = vpop.permute.xlu0 %273
      %275 = vrot.lane.b32.xlu0 %v209, 108
      %v276 = vpop.permute.xlu0 %275
      %vm277 = vcmask 883712
      %v278 = vsel %vm277, %v272, %v274
      %v279 = vsel %vm277, %v274, %v276
      %283 = vst [vmem:[#allocation2 + $0x30] sm:$0xf0] %v278
      %284 = vst [vmem:[#allocation2 + $0x38] sm:$0xf0] %v279
      %285 = vst.msk [vmem:[#allocation2 + $0x40] sm:$0xf0] %vm224, %v276
      %286 = vrot.lane.b32.xlu0 %v198, 92
      %v287 = vpop.permute.xlu0 %286
      %288 = vrot.lane.b32.xlu0 %v202, 92
      %v289 = vpop.permute.xlu0 %288
      %290 = vrot.lane.b32.xlu0 %v199, 92
      %v291 = vpop.permute.xlu0 %290
      %vm292 = vcmask 752640
      %v293 = vsel %vm292, %v287, %v289
      %v294 = vsel %vm292, %v289, %v291
      %298 = vst [vmem:[#allocation2 + $0x48] sm:$0xf] %v293
      %299 = vst [vmem:[#allocation2 + $0x50] sm:$0xf] %v294
      %300 = vst.msk [vmem:[#allocation2 + $0x58] sm:$0xf] %vm206, %v291
      %301 = vrot.lane.b32.xlu0 %v208, 91
      %v302 = vpop.permute.xlu0 %301
      %303 = vrot.lane.b32.xlu0 %v198, 91
      %v304 = vpop.permute.xlu0 %303
      %305 = vrot.lane.b32.xlu0 %v209, 91
      %v306 = vpop.permute.xlu0 %305
      %vm307 = vcmask 744448
      %v308 = vsel %vm307, %v302, %v304
      %v309 = vsel %vm307, %v304, %v306
      %313 = vst [vmem:[#allocation2 + $0x48] sm:$0xf0] %v308
      %314 = vst [vmem:[#allocation2 + $0x50] sm:$0xf0] %v309
      %315 = vst.msk [vmem:[#allocation2 + $0x58] sm:$0xf0] %vm224, %v306
      %316 = vrot.lane.b32.xlu0 %v198, 90
      %v317 = vpop.permute.xlu0 %316
      %318 = vrot.lane.b32.xlu0 %v202, 90
      %v319 = vpop.permute.xlu0 %318
      %320 = vrot.lane.b32.xlu0 %v199, 90
      %v321 = vpop.permute.xlu0 %320
      %vm322 = vcmask 736256
      %v323 = vsel %vm322, %v317, %v319
      %v324 = vsel %vm322, %v319, %v321
      %328 = vst [vmem:[#allocation2 + $0x60] sm:$0xf] %v323
      %329 = vst [vmem:[#allocation2 + $0x68] sm:$0xf] %v324
      %330 = vst.msk [vmem:[#allocation2 + $0x70] sm:$0xf] %vm206, %v321
      %v331 = vlaneseq
      %vm332 = vcmp.ge.s32.totalorder %v331, 0
      %vm333 = vcmp.lt.s32.totalorder %v331, 288
      %vm334 = vmand %vm332, %vm333
      %s335 = scalar_lea.vmem [#allocation2], 100
      %336 = vst.msk [vmem:[%s335] ss:$8 sm:$0x7] %vm334, 1.0
      %337 = vst.msk [vmem:[%s335] ss:$8 sm:$0x0] %vm334, 1.0
      %v338 = vld [vmem:[#allocation2] sm:$0xff]
      %v339 = vld [vmem:[#allocation2 + $0x8] sm:$0xff]
      %v340 = vld [vmem:[#allocation2 + $0x10] sm:$0xff]
      %v341 = vld [vmem:[#allocation2 + $0x18] sm:$0xff]
      %v342 = vld [vmem:[#allocation2 + $0x20] sm:$0xff]
      %v343 = vld [vmem:[#allocation2 + $0x28] sm:$0xff]
      %v344 = vld [vmem:[#allocation2 + $0x30] sm:$0xff]
      %v345 = vld [vmem:[#allocation2 + $0x38] sm:$0xff]
      %v346 = vld [vmem:[#allocation2 + $0x40] sm:$0xff]
      %v347 = vld [vmem:[#allocation2 + $0x48] sm:$0xff]
      %v348 = vld [vmem:[#allocation2 + $0x50] sm:$0xff]
      %v349 = vld [vmem:[#allocation2 + $0x58] sm:$0xff]
      %v350 = vld [vmem:[#allocation2 + $0x60] sm:$0x1f]
      %v351 = vld [vmem:[#allocation2 + $0x68] sm:$0x1f]
      %v352 = vld [vmem:[#allocation2 + $0x70] sm:$0x1f]
      %v353 = vld [vmem:[%s1] sm:$0xff]
      %v354 = vld [vmem:[%s1 + $0x8] sm:$0xff]
      %v355 = vld [vmem:[%s1 + $0x10] sm:$0xff]
      %v356 = vld [vmem:[%s1 + $0x18] sm:$0xff]
      %vm357 = vcmask 302080
      %v359 = vsel %vm357, %v353, 0
      %v362 = vsel %vm357, %v354, 0
      %v365 = vsel %vm357, %v355, 0
      %v368 = vsel %vm357, %v356, 0
      %vm370 = vcmask 1044480
      %v372 = vsel %vm370, %v350, 0
      %v375 = vsel %vm370, %v351, 0
      %v378 = vsel %vm370, %v352, 0
      %380 = vmatprep.subr.mxu0 %v339
      %381 = vmatpush1.msra.mxu0 %v338
      %382 = vmatprep.subr.mxu0 %v342
      %383 = vmatpush1.msra.mxu0 %v341
      %384 = vmatprep.subr.mxu0 %v345
      %385 = vmatpush1.msra.mxu0 %v344
      %386 = vmatprep.subr.mxu0 %v348
      %387 = vmatpush1.msra.mxu0 %v347
      %388 = vmatprep.subr.mxu0 %v375
      %389 = vmatpush1.msra.mxu0 %v372
      %390 = vmatprep.subr.mxu0 0.0
      %391 = vmatpush1.msra.mxu0 0.0
      %392 = vmatprep.subr.mxu0 0.0
      %393 = vmatpush1.msra.mxu0 0.0
      %394 = vmatprep.subr.mxu0 0.0
      %395 = vmatpush1.msra.mxu0 0.0
      %396 = vmatprep.subr.mxu0 0.0
      %397 = vmatpush1.msra.mxu0 0.0
      %398 = vmatprep.subr.mxu0 0.0
      %399 = vmatpush1.msra.mxu0 0.0
      %400 = vmatprep.subr.mxu0 0.0
      %401 = vmatpush1.msra.mxu0 0.0
      %402 = vmatprep.subr.mxu0 0.0
      %403 = vmatpush1.msra.mxu0 0.0
      %404 = vmatprep.subr.mxu0 0.0
      %405 = vmatpush1.msra.mxu0 0.0
      %406 = vmatprep.subr.mxu0 0.0
      %407 = vmatpush1.msra.mxu0 0.0
      %408 = vmatprep.subr.mxu0 0.0
      %409 = vmatpush1.msra.mxu0 0.0
      %410 = vmatprep.subr.mxu0 0.0
      %411 = vmatpush1.msra.mxu0 0.0
      %412 = vmatprep.subr.mxu0 0.0
      %413 = vmatpush1.msra.mxu0 0.0
      %414 = vmatprep.subr.mxu0 0.0
      %415 = vmatpush1.msra.mxu0 0.0
      %416 = vmatprep.subr.mxu0 0.0
      %417 = vmatpush1.msra.mxu0 0.0
      %418 = vmatprep.subr.mxu0 0.0
      %419 = vmatpush1.msra.mxu0 0.0
      %420 = vmatprep.subr.mxu0 0.0
      %421 = vmatpush1.msra.mxu0 0.0
      %422 = vmatprep.subr.mxu0 0.0
      %423 = vmatpush1.msra.mxu0 0.0
      %424 = vmatprep.subr.mxu0 0.0
      %425 = vmatpush1.msra.mxu0 0.0
      %426 = vmatprep.subr.mxu0 0.0
      %427 = vmatpush1.msra.mxu0 0.0
      %428 = vmatprep.subr.mxu0 0.0
      %429 = vmatpush1.msra.mxu0 0.0
      %430 = vmatprep.subr.mxu0 0.0
      %431 = vmatpush1.msra.mxu0 0.0
      %432 = vmatprep.subr.mxu0 0.0
      %433 = vmatpush1.msra.mxu0 0.0
      %434 = vmatprep.subr.mxu0 0.0
      %435 = vmatpush1.msra.mxu0 0.0
      %436 = vmatprep.subr.mxu0 0.0
      %437 = vmatpush1.msra.mxu0 0.0
      %438 = vmatprep.subr.mxu0 0.0
      %439 = vmatpush1.msra.mxu0 0.0
      %440 = vmatprep.subr.mxu0 0.0
      %441 = vmatpush1.msra.mxu0 0.0
      %442 = vmatprep.subr.mxu0 0.0
      %443 = vmatpush1.msra.mxu0 0.0
      %444 = vmatprep.mubr.f32.mxu0 0.0
      %445 = vmatmul.mubr.f32.gmra.mrb[0].mxu0 %v359
      %v446 = vpop.f32.mrb[0].mxu0
      %v447 = vadd.f32 0.0, %v446
      %v448 = vpop.f32.mrb[0].mxu0
      %v449 = vadd.f32 0.0, %v448
      %450 = vmatprep.mubr.f32.mxu0 0.0
      %451 = vmatmul.mubr.f32.gmra.mrb[0].mxu0 %v362
      %v452 = vpop.f32.mrb[0].mxu0
      %v453 = vadd.f32 0.0, %v452
      %v454 = vpop.f32.mrb[0].mxu0
      %v455 = vadd.f32 0.0, %v454
      %456 = vmatprep.mubr.f32.mxu0 0.0
      %457 = vmatmul.mubr.f32.gmra.mrb[0].mxu0 %v365
      %v458 = vpop.f32.mrb[0].mxu0
      %v459 = vadd.f32 0.0, %v458
      %v460 = vpop.f32.mrb[0].mxu0
      %v461 = vadd.f32 0.0, %v460
      %462 = vmatprep.mubr.f32.mxu0 0.0
      %463 = vmatmul.mubr.f32.gmra.mrb[0].mxu0 %v368
      %v464 = vpop.f32.mrb[0].mxu0
      %v465 = vadd.f32 0.0, %v464
      %v466 = vpop.f32.mrb[0].mxu0
      %v467 = vadd.f32 0.0, %v466
      %468 = vdwg.mxu0
      %469 = vmatprep.subr.mxu0 0.0
      %470 = vmatpush1.msra.mxu0 %v340
      %471 = vmatprep.subr.mxu0 0.0
      %472 = vmatpush1.msra.mxu0 %v343
      %473 = vmatprep.subr.mxu0 0.0
      %474 = vmatpush1.msra.mxu0 %v346
      %475 = vmatprep.subr.mxu0 0.0
      %476 = vmatpush1.msra.mxu0 %v349
      %477 = vmatprep.subr.mxu0 0.0
      %478 = vmatpush1.msra.mxu0 %v378
      %479 = vmatprep.subr.mxu0 0.0
      %480 = vmatpush1.msra.mxu0 0.0
      %481 = vmatprep.subr.mxu0 0.0
      %482 = vmatpush1.msra.mxu0 0.0
      %483 = vmatprep.subr.mxu0 0.0
      %484 = vmatpush1.msra.mxu0 0.0
      %485 = vmatprep.subr.mxu0 0.0
      %486 = vmatpush1.msra.mxu0 0.0
      %487 = vmatprep.subr.mxu0 0.0
      %488 = vmatpush1.msra.mxu0 0.0
      %489 = vmatprep.subr.mxu0 0.0
      %490 = vmatpush1.msra.mxu0 0.0
      %491 = vmatprep.subr.mxu0 0.0
      %492 = vmatpush1.msra.mxu0 0.0
      %493 = vmatprep.subr.mxu0 0.0
      %494 = vmatpush1.msra.mxu0 0.0
      %495 = vmatprep.subr.mxu0 0.0
      %496 = vmatpush1.msra.mxu0 0.0
      %497 = vmatprep.subr.mxu0 0.0
      %498 = vmatpush1.msra.mxu0 0.0
      %499 = vmatprep.subr.mxu0 0.0
      %500 = vmatpush1.msra.mxu0 0.0
      %501 = vmatprep.subr.mxu0 0.0
      %502 = vmatpush1.msra.mxu0 0.0
      %503 = vmatprep.subr.mxu0 0.0
      %504 = vmatpush1.msra.mxu0 0.0
      %505 = vmatprep.subr.mxu0 0.0
      %506 = vmatpush1.msra.mxu0 0.0
      %507 = vmatprep.subr.mxu0 0.0
      %508 = vmatpush1.msra.mxu0 0.0
      %509 = vmatprep.subr.mxu0 0.0
      %510 = vmatpush1.msra.mxu0 0.0
      %511 = vmatprep.subr.mxu0 0.0
      %512 = vmatpush1.msra.mxu0 0.0
      %513 = vmatprep.subr.mxu0 0.0
      %514 = vmatpush1.msra.mxu0 0.0
      %515 = vmatprep.subr.mxu0 0.0
      %516 = vmatpush1.msra.mxu0 0.0
      %517 = vmatprep.subr.mxu0 0.0
      %518 = vmatpush1.msra.mxu0 0.0
      %519 = vmatprep.subr.mxu0 0.0
      %520 = vmatpush1.msra.mxu0 0.0
      %521 = vmatprep.subr.mxu0 0.0
      %522 = vmatpush1.msra.mxu0 0.0
      %523 = vmatprep.subr.mxu0 0.0
      %524 = vmatpush1.msra.mxu0 0.0
      %525 = vmatprep.subr.mxu0 0.0
      %526 = vmatpush1.msra.mxu0 0.0
      %527 = vmatprep.subr.mxu0 0.0
      %528 = vmatpush1.msra.mxu0 0.0
      %529 = vmatprep.subr.mxu0 0.0
      %530 = vmatpush1.msra.mxu0 0.0
      %531 = vmatprep.subr.mxu0 0.0
      %532 = vmatpush1.msra.mxu0 0.0
      %533 = vmatprep.mubr.f32.mxu0 0.0
      %534 = vmatmul.mubr.f32.gmra.mrb[0].mxu0 %v359
      %v535 = vpop.f32.mrb[0].mxu0
      %v536 = vadd.f32 0.0, %v535
      %v537 = vpop.f32.mrb[0].mxu0
      %538 = vmatprep.mubr.f32.mxu0 0.0
      %539 = vmatmul.mubr.f32.gmra.mrb[0].mxu0 %v362
      %v540 = vpop.f32.mrb[0].mxu0
      %v541 = vadd.f32 0.0, %v540
      %v542 = vpop.f32.mrb[0].mxu0
      %543 = vmatprep.mubr.f32.mxu0 0.0
      %544 = vmatmul.mubr.f32.gmra.mrb[0].mxu0 %v365
      %v545 = vpop.f32.mrb[0].mxu0
      %v546 = vadd.f32 0.0, %v545
      %v547 = vpop.f32.mrb[0].mxu0
      %548 = vmatprep.mubr.f32.mxu0 0.0
      %549 = vmatmul.mubr.f32.gmra.mrb[0].mxu0 %v368
      %v550 = vpop.f32.mrb[0].mxu0
      %v551 = vadd.f32 0.0, %v550
      %v552 = vpop.f32.mrb[0].mxu0
      %553 = vdwg.mxu0
      %v554 = vmax.f32 %v447, 0.0
      %v555 = vmax.f32 %v449, 0.0
      %v556 = vmax.f32 %v536, 0.0
      %v557 = vmax.f32 %v453, 0.0
      %v558 = vmax.f32 %v455, 0.0
      %v559 = vmax.f32 %v541, 0.0
      %v560 = vmax.f32 %v459, 0.0
      %v561 = vmax.f32 %v461, 0.0
      %v562 = vmax.f32 %v546, 0.0
      %v563 = vmax.f32 %v465, 0.0
      %v564 = vmax.f32 %v467, 0.0
      %v565 = vmax.f32 %v551, 0.0
      %v566 = vld [vmem:[%s2] sm:$0xff]
      %v567 = vld [vmem:[%s2 + $0x8] sm:$0xff]
      %v568 = vld [vmem:[%s2 + $0x10] sm:$0x1f]
      %v569 = vld [vmem:[%s3] sm:$0xff]
      %v570 = vld [vmem:[%s3 + $0x8] sm:$0xff]
      %v571 = vld [vmem:[%s3 + $0x10] sm:$0x1f]
      %573 = vset.pattern.permute.xlu0 0
      %574 = vperm.xlu0 %573, %v569
      %v575 = vpop.permute.xlu0 %574
      %578 = vset.pattern.permute.xlu0 0
      %579 = vperm.xlu0 %578, %v570
      %v580 = vpop.permute.xlu0 %579
      %583 = vset.pattern.permute.xlu0 0
      %584 = vperm.xlu0 %583, %v571
      %v585 = vpop.permute.xlu0 %584
      %vm587 = vcmask 261120
      %v589 = vsel %vm587, %v566, 0
      %v592 = vsel %vm587, %v567, 0
      %v595 = vsel %vm587, %v568, 0
      %597 = vmatprep.subr.mxu0 %v555
      %598 = vmatpush1.msra.mxu0 %v554
      %599 = vmatprep.subr.mxu0 %v558
      %600 = vmatpush1.msra.mxu0 %v557
      %601 = vmatprep.subr.mxu0 %v561
      %602 = vmatpush1.msra.mxu0 %v560
      %603 = vmatprep.subr.mxu0 %v564
      %604 = vmatpush1.msra.mxu0 %v563
      %605 = vmatprep.subr.mxu0 0.0
      %606 = vmatpush1.msra.mxu0 0.0
      %607 = vmatprep.subr.mxu0 0.0
      %608 = vmatpush1.msra.mxu0 0.0
      %609 = vmatprep.subr.mxu0 0.0
      %610 = vmatpush1.msra.mxu0 0.0
      %611 = vmatprep.subr.mxu0 0.0
      %612 = vmatpush1.msra.mxu0 0.0
      %613 = vmatprep.subr.mxu0 0.0
      %614 = vmatpush1.msra.mxu0 0.0
      %615 = vmatprep.subr.mxu0 0.0
      %616 = vmatpush1.msra.mxu0 0.0
      %617 = vmatprep.subr.mxu0 0.0
      %618 = vmatpush1.msra.mxu0 0.0
      %619 = vmatprep.subr.mxu0 0.0
      %620 = vmatpush1.msra.mxu0 0.0
      %621 = vmatprep.subr.mxu0 0.0
      %622 = vmatpush1.msra.mxu0 0.0
      %623 = vmatprep.subr.mxu0 0.0
      %624 = vmatpush1.msra.mxu0 0.0
      %625 = vmatprep.subr.mxu0 0.0
      %626 = vmatpush1.msra.mxu0 0.0
      %627 = vmatprep.subr.mxu0 0.0
      %628 = vmatpush1.msra.mxu0 0.0
      %629 = vmatprep.subr.mxu0 0.0
      %630 = vmatpush1.msra.mxu0 0.0
      %631 = vmatprep.subr.mxu0 0.0
      %632 = vmatpush1.msra.mxu0 0.0
      %633 = vmatprep.subr.mxu0 0.0
      %634 = vmatpush1.msra.mxu0 0.0
      %635 = vmatprep.subr.mxu0 0.0
      %636 = vmatpush1.msra.mxu0 0.0
      %637 = vmatprep.subr.mxu0 0.0
      %638 = vmatpush1.msra.mxu0 0.0
      %639 = vmatprep.subr.mxu0 0.0
      %640 = vmatpush1.msra.mxu0 0.0
      %641 = vmatprep.subr.mxu0 0.0
      %642 = vmatpush1.msra.mxu0 0.0
      %643 = vmatprep.subr.mxu0 0.0
      %644 = vmatpush1.msra.mxu0 0.0
      %645 = vmatprep.subr.mxu0 0.0
      %646 = vmatpush1.msra.mxu0 0.0
      %647 = vmatprep.subr.mxu0 0.0
      %648 = vmatpush1.msra.mxu0 0.0
      %649 = vmatprep.subr.mxu0 0.0
      %650 = vmatpush1.msra.mxu0 0.0
      %651 = vmatprep.subr.mxu0 0.0
      %652 = vmatpush1.msra.mxu0 0.0
      %653 = vmatprep.subr.mxu0 0.0
      %654 = vmatpush1.msra.mxu0 0.0
      %655 = vmatprep.subr.mxu0 0.0
      %656 = vmatpush1.msra.mxu0 0.0
      %657 = vmatprep.subr.mxu0 0.0
      %658 = vmatpush1.msra.mxu0 0.0
      %659 = vmatprep.subr.mxu0 0.0
      %660 = vmatpush1.msra.mxu0 0.0
      %661 = vmatprep.mubr.f32.mxu0 0.0
      %662 = vmatmul.mubr.f32.gmra.mrb[0].mxu0 %v589
      %v663 = vpop.f32.mrb[0].mxu0
      %v664 = vadd.f32 %v575, %v663
      %v665 = vpop.f32.mrb[0].mxu0
      %v666 = vadd.f32 %v575, %v665
      %667 = vmatprep.mubr.f32.mxu0 0.0
      %668 = vmatmul.mubr.f32.gmra.mrb[0].mxu0 %v592
      %v669 = vpop.f32.mrb[0].mxu0
      %v670 = vadd.f32 %v580, %v669
      %v671 = vpop.f32.mrb[0].mxu0
      %v672 = vadd.f32 %v580, %v671
      %673 = vmatprep.mubr.f32.mxu0 0.0
      %674 = vmatmul.mubr.f32.gmra.mrb[0].mxu0 %v595
      %v675 = vpop.f32.mrb[0].mxu0
      %v676 = vadd.f32 %v585, %v675
      %v677 = vpop.f32.mrb[0].mxu0
      %v678 = vadd.f32 %v585, %v677
      %679 = vdwg.mxu0
      %680 = vmatprep.subr.mxu0 0.0
      %681 = vmatpush1.msra.mxu0 %v556
      %682 = vmatprep.subr.mxu0 0.0
      %683 = vmatpush1.msra.mxu0 %v559
      %684 = vmatprep.subr.mxu0 0.0
      %685 = vmatpush1.msra.mxu0 %v562
      %686 = vmatprep.subr.mxu0 0.0
      %687 = vmatpush1.msra.mxu0 %v565
      %688 = vmatprep.subr.mxu0 0.0
      %689 = vmatpush1.msra.mxu0 0.0
      %690 = vmatprep.subr.mxu0 0.0
      %691 = vmatpush1.msra.mxu0 0.0
      %692 = vmatprep.subr.mxu0 0.0
      %693 = vmatpush1.msra.mxu0 0.0
      %694 = vmatprep.subr.mxu0 0.0
      %695 = vmatpush1.msra.mxu0 0.0
      %696 = vmatprep.subr.mxu0 0.0
      %697 = vmatpush1.msra.mxu0 0.0
      %698 = vmatprep.subr.mxu0 0.0
      %699 = vmatpush1.msra.mxu0 0.0
      %700 = vmatprep.subr.mxu0 0.0
      %701 = vmatpush1.msra.mxu0 0.0
      %702 = vmatprep.subr.mxu0 0.0
      %703 = vmatpush1.msra.mxu0 0.0
      %704 = vmatprep.subr.mxu0 0.0
      %705 = vmatpush1.msra.mxu0 0.0
      %706 = vmatprep.subr.mxu0 0.0
      %707 = vmatpush1.msra.mxu0 0.0
      %708 = vmatprep.subr.mxu0 0.0
      %709 = vmatpush1.msra.mxu0 0.0
      %710 = vmatprep.subr.mxu0 0.0
      %711 = vmatpush1.msra.mxu0 0.0
      %712 = vmatprep.subr.mxu0 0.0
      %713 = vmatpush1.msra.mxu0 0.0
      %714 = vmatprep.subr.mxu0 0.0
      %715 = vmatpush1.msra.mxu0 0.0
      %716 = vmatprep.subr.mxu0 0.0
      %717 = vmatpush1.msra.mxu0 0.0
      %718 = vmatprep.subr.mxu0 0.0
      %719 = vmatpush1.msra.mxu0 0.0
      %720 = vmatprep.subr.mxu0 0.0
      %721 = vmatpush1.msra.mxu0 0.0
      %722 = vmatprep.subr.mxu0 0.0
      %723 = vmatpush1.msra.mxu0 0.0
      %724 = vmatprep.subr.mxu0 0.0
      %725 = vmatpush1.msra.mxu0 0.0
      %726 = vmatprep.subr.mxu0 0.0
      %727 = vmatpush1.msra.mxu0 0.0
      %728 = vmatprep.subr.mxu0 0.0
      %729 = vmatpush1.msra.mxu0 0.0
      %730 = vmatprep.subr.mxu0 0.0
      %731 = vmatpush1.msra.mxu0 0.0
      %732 = vmatprep.subr.mxu0 0.0
      %733 = vmatpush1.msra.mxu0 0.0
      %734 = vmatprep.subr.mxu0 0.0
      %735 = vmatpush1.msra.mxu0 0.0
      %736 = vmatprep.subr.mxu0 0.0
      %737 = vmatpush1.msra.mxu0 0.0
      %738 = vmatprep.subr.mxu0 0.0
      %739 = vmatpush1.msra.mxu0 0.0
      %740 = vmatprep.subr.mxu0 0.0
      %741 = vmatpush1.msra.mxu0 0.0
      %742 = vmatprep.subr.mxu0 0.0
      %743 = vmatpush1.msra.mxu0 0.0
      %744 = vmatprep.mubr.f32.mxu0 0.0
      %745 = vmatmul.mubr.f32.gmra.mrb[0].mxu0 %v589
      %v746 = vpop.f32.mrb[0].mxu0
      %v747 = vadd.f32 %v575, %v746
      %v748 = vpop.f32.mrb[0].mxu0
      %749 = vmatprep.mubr.f32.mxu0 0.0
      %750 = vmatmul.mubr.f32.gmra.mrb[0].mxu0 %v592
      %v751 = vpop.f32.mrb[0].mxu0
      %v752 = vadd.f32 %v580, %v751
      %v753 = vpop.f32.mrb[0].mxu0
      %754 = vmatprep.mubr.f32.mxu0 0.0
      %755 = vmatmul.mubr.f32.gmra.mrb[0].mxu0 %v595
      %v756 = vpop.f32.mrb[0].mxu0
      %v757 = vadd.f32 %v585, %v756
      %v758 = vpop.f32.mrb[0].mxu0
      %759 = vdwg.mxu0
      %v760 = vsub.f32 0.0, %v664
      %v761 = vsub.f32 0.0, %v666
      %v762 = vsub.f32 0.0, %v747
      %v763 = vsub.f32 0.0, %v670
      %v764 = vsub.f32 0.0, %v672
      %v765 = vsub.f32 0.0, %v752
      %v766 = vsub.f32 0.0, %v676
      %v767 = vsub.f32 0.0, %v678
      %v768 = vsub.f32 0.0, %v757
      %v769 = vmul.f32 %v760, 1.442695
      %v770 = vpow.pop %v769
      %v771 = vmul.f32 %v761, 1.442695
      %v772 = vpow.pop %v771
      %v773 = vmul.f32 %v762, 1.442695
      %v774 = vpow.pop %v773
      %v775 = vmul.f32 %v763, 1.442695
      %v776 = vpow.pop %v775
      %v777 = vmul.f32 %v764, 1.442695
      %v778 = vpow.pop %v777
      %v779 = vmul.f32 %v765, 1.442695
      %v780 = vpow.pop %v779
      %v781 = vmul.f32 %v766, 1.442695
      %v782 = vpow.pop %v781
      %v783 = vmul.f32 %v767, 1.442695
      %v784 = vpow.pop %v783
      %v785 = vmul.f32 %v768, 1.442695
      %v786 = vpow.pop %v785
      %v787 = vadd.f32 %v770, 1.0
      %v788 = vadd.f32 %v772, 1.0
      %v789 = vadd.f32 %v774, 1.0
      %v790 = vadd.f32 %v776, 1.0
      %v791 = vadd.f32 %v778, 1.0
      %v792 = vadd.f32 %v780, 1.0
      %v793 = vadd.f32 %v782, 1.0
      %v794 = vadd.f32 %v784, 1.0
      %v795 = vadd.f32 %v786, 1.0
      %v796 = vrcp.pop %v787
      %v797 = vrcp.pop %v788
      %v798 = vrcp.pop %v789
      %v799 = vrcp.pop %v790
      %v800 = vrcp.pop %v791
      %v801 = vrcp.pop %v792
      %v802 = vrcp.pop %v793
      %v803 = vrcp.pop %v794
      %v804 = vrcp.pop %v795
      %805 = vst [vmem:[%s197] sm:$0xff] %v796
      %806 = vst [vmem:[%s197 + $0x8] sm:$0xff] %v797
      %807 = vst.msk [vmem:[%s197 + $0x10] sm:$0xff] %vm587, %v798
      %808 = vst [vmem:[%s197 + $0x18] sm:$0xff] %v799
      %809 = vst [vmem:[%s197 + $0x20] sm:$0xff] %v800
      %810 = vst.msk [vmem:[%s197 + $0x28] sm:$0xff] %vm587, %v801
      %811 = vst [vmem:[%s197 + $0x30] sm:$0x1f] %v802
      %812 = vst [vmem:[%s197 + $0x38] sm:$0x1f] %v803
      %vm813 = vcmask 258048
      %814 = vst.msk [vmem:[%s197 + $0x40] sm:$0x1f] %vm813, %v804
      %p815 = scmp.lt.s32.totalorder %s15, 1
      %s816 = scalar_select %p815, %s15, 1
      %s817 = smul.addr %s816, 9
      %s818 = smul.addr %s817, 8
      %s819 = scalar_lea.vmem %s4, %s818
      // Predicated region
      $region37: #{net_2d_forward.1} parent=35 // pred_check
        %p820 = pneg %p122
      $region38: #{net_2d_forward.1} parent=35 // pred_check_branch
        %822 = sbr.rel (%p820) target = $region40
      $region39: #{net_2d_forward.1} parent=35 // pred_region
        _
      $region40: #{net_2d_forward.1} parent=35 // pred_fallthru
        _
    $region36: #{net_2d_forward.1} parent=5 // pred_fallthru
      _
    %p823 = scmp.le.s32.totalorder 2, %s10
    // Predicated region
    $region41: #{net_2d_forward.1} parent=5 // pred_check
      %p824 = pneg %p823
    $region42: #{net_2d_forward.1} parent=5 // pred_check_branch
      %826 = sbr.rel (%p824) target = $region44
    $region43: #{net_2d_forward.1} parent=5 // pred_region
      %s827 = ssub.s32 %s10, 2
      // Predicated region
      $region45: #{net_2d_forward.1} parent=43 // pred_check
        %p828 = pneg %p128
      $region46: #{net_2d_forward.1} parent=43 // pred_check_branch
        %830 = sbr.rel (%p828) target = $region48
      $region47: #{net_2d_forward.1} parent=43 // pred_region
        %p831 = scmp.lt.s32.totalorder %s16, 1
        %s832 = scalar_select %p831, %s16, 1
        %s833 = smul.addr %s832, 9
        %s834 = smul.addr %s833, 8
        %s835 = scalar_lea.vmem %s4, %s834
      $region48: #{net_2d_forward.1} parent=43 // pred_fallthru
        _
    $region44: #{net_2d_forward.1} parent=5 // pred_fallthru
      _
  $region6: #{net_2d_forward.1} parent=0 // loop_footer
    %s14 = sadd.s32 1, %s10
  $region7: #{net_2d_forward.1} parent=0 // loop_footer_branch
    %9 = sbr.rel target = $region3
  $region8: #{net_2d_forward.1} parent=0 // loop_exit
    _

</llo_original>
